<compile_context>
chip_gen: v6e
topology: v6e:2x2x1
jax: 0.10.0
libtpu: 0.0.40
codegen_flags: <defaults>
</compile_context>

<pallas_src>
import functools

import jax
import jax.numpy as jnp
from jax.experimental import pallas as pl
from jax.experimental.pallas import tpu as pltpu


def _se_reduce_excite_kernel(inv_s, x_ref, w1_ref, b1_ref, w2_ref, b2_ref,
                             attn_ref, acc_ref):
    # x_ref    : (1, C, TS)  activations for one batch element, one S tile
    # w1_ref   : (Ch, C)     linear_1 weight
    # b1_ref   : (Ch, 1)
    # w2_ref   : (C, Ch)     linear_2 weight
    # b2_ref   : (C, 1)
    # attn_ref : (1, C, 1)   per-channel attention output
    # acc_ref  : (C, 1) f32  VMEM scratch: running channel sums over S tiles
    s_idx = pl.program_id(1)

    @pl.when(s_idx == 0)
    def _():
        acc_ref[...] = jnp.zeros_like(acc_ref)

    x = x_ref[0].astype(jnp.float32)                        # (C, TS)
    acc_ref[...] += jnp.sum(x, axis=-1, keepdims=True)      # lane reduce -> (C, 1)

    @pl.when(s_idx == pl.num_programs(1) - 1)
    def _():
        m = acc_ref[...] * inv_s                            # (C, 1) channel mean
        h = jnp.dot(w1_ref[...], m, preferred_element_type=jnp.float32)
        h = jnp.maximum(h + b1_ref[...], 0.0)               # (Ch, 1)
        a = jnp.dot(w2_ref[...], h, preferred_element_type=jnp.float32)
        a = jax.nn.sigmoid(a + b2_ref[...])                 # (C, 1)
        attn_ref[0] = a


def _se_scale_kernel(x_ref, a_ref, out_ref):
    # x_ref   : (1, C, TS)
    # a_ref   : (1, C, 1)  f32 attention
    # out_ref : (1, C, TS)
    x = x_ref[0].astype(jnp.float32)                        # (C, TS)
    a = a_ref[0]                                            # (C, 1)
    out_ref[0] = (x * a).astype(out_ref.dtype)              # lane broadcast


def _pick_s_tile(s, target):
    """Largest multiple of 128 that divides s and is <= target; else full s."""
    if s <= target:
        return s
    t = (min(target, s) // 128) * 128
    while t >= 128:
        if s % t == 0:
            return t
        t -= 128
    return s


def senet_pallas(x_ncdhw, w1, b1, w2, b2, *, s_tile_target=2048):
    """SENet forward. x_ncdhw: (N, C, D, H, W). Returns same shape/layout."""
    N, C, D, H, W = x_ncdhw.shape
    S = D * H * W
    Ch = w1.shape[0]
    dtype = x_ncdhw.dtype

    # Free, contiguous reshape: channels stay on sublanes, spatial -> lanes.
    x = x_ncdhw.reshape(N, C, S)
    w1f = w1.astype(jnp.float32)                 # (Ch, C)
    w2f = w2.astype(jnp.float32)                 # (C, Ch)
    b1c = b1.reshape(Ch, 1).astype(jnp.float32)  # (Ch, 1)
    b2c = b2.reshape(C, 1).astype(jnp.float32)   # (C, 1)

    ts = _pick_s_tile(S, s_tile_target)
    n_s = S // ts

    itemsize = jnp.dtype(dtype).itemsize
    blk_bytes = C * ts * itemsize
    # double-buffered in + out blocks, params, attention + headroom
    vmem_limit = int(min(64 * 1024 * 1024,
                         max(6 * blk_bytes + (1 << 20), 16 * 1024 * 1024)))

    # ---- Pass 1: squeeze (channel means over S tiles) + excitation MLP ----
    attn = pl.pallas_call(
        functools.partial(_se_reduce_excite_kernel, 1.0 / S),
        out_shape=jax.ShapeDtypeStruct((N, C, 1), jnp.float32),
        grid_spec=pltpu.PrefetchScalarGridSpec(
            num_scalar_prefetch=0,
            grid=(N, n_s),
            in_specs=[
                pl.BlockSpec((1, C, ts), lambda n, s: (n, 0, s)),
                pl.BlockSpec((Ch, C), lambda n, s: (0, 0)),
                pl.BlockSpec((Ch, 1), lambda n, s: (0, 0)),
                pl.BlockSpec((C, Ch), lambda n, s: (0, 0)),
                pl.BlockSpec((C, 1), lambda n, s: (0, 0)),
            ],
            out_specs=pl.BlockSpec((1, C, 1), lambda n, s: (n, 0, 0)),
            scratch_shapes=[pltpu.VMEM((C, 1), jnp.float32)],
        ),
        compiler_params=pltpu.CompilerParams(
            dimension_semantics=("parallel", "arbitrary"),
            vmem_limit_bytes=vmem_limit,
        ),
    )(x, w1f, b1c, w2f, b2c)

    # ---- Pass 2: scale (broadcast channel attention over spatial lanes) ----
    out = pl.pallas_call(
        _se_scale_kernel,
        out_shape=jax.ShapeDtypeStruct((N, C, S), dtype),
        grid_spec=pltpu.PrefetchScalarGridSpec(
            num_scalar_prefetch=0,
            grid=(N, n_s),
            in_specs=[
                pl.BlockSpec((1, C, ts), lambda n, s: (n, 0, s)),
                pl.BlockSpec((1, C, 1), lambda n, s: (n, 0, 0)),
            ],
            out_specs=pl.BlockSpec((1, C, ts), lambda n, s: (n, 0, s)),
        ),
        compiler_params=pltpu.CompilerParams(
            dimension_semantics=("parallel", "parallel"),
            vmem_limit_bytes=vmem_limit,
        ),
    )(x, attn)

    # Free, contiguous reshape back to NCDHW (no layout pass).
    return out.reshape(N, C, D, H, W)


def senet_reference(x_ncdhw, w1, b1, w2, b2):
    """Pure-JAX reference matching the PyTorch SENet forward exactly."""
    x = jnp.transpose(x_ncdhw, (0, 2, 3, 4, 1))             # NDHWC
    s = jnp.mean(x, axis=(1, 2, 3), keepdims=True)          # (N,1,1,1,C)
    h = jax.nn.relu(jnp.einsum("...c,hc->...h", s, w1) + b1)
    a = jax.nn.sigmoid(jnp.einsum("...h,ch->...c", h, w2) + b2)
    return jnp.transpose(x * a, (0, 4, 1, 2, 3))            # NCDHW


if __name__ == "__main__":
    # Small shapes consistent with CNNSE's first SENet(64): C=64, dim_red_factor=16 -> Ch=4.
    N, C, D, H, W = 2, 64, 4, 8, 8
    dim_red_factor = 16
    Ch = int(C / dim_red_factor)

    key = jax.random.PRNGKey(0)
    kx, kw1, kb1, kw2, kb2 = jax.random.split(key, 5)

    x = jax.random.normal(kx, (N, C, D, H, W), dtype=jnp.float32)

    # Deterministic parameter init mimicking torch.nn.Linear (uniform +-1/sqrt(fan_in)).
    lim1 = 1.0 / jnp.sqrt(C)
    lim2 = 1.0 / jnp.sqrt(Ch)
    w1 = jax.random.uniform(kw1, (Ch, C), jnp.float32, -lim1, lim1)   # linear_1.weight
    b1 = jax.random.uniform(kb1, (Ch,), jnp.float32, -lim1, lim1)     # linear_1.bias
    w2 = jax.random.uniform(kw2, (C, Ch), jnp.float32, -lim2, lim2)   # linear_2.weight
    b2 = jax.random.uniform(kb2, (C,), jnp.float32, -lim2, lim2)      # linear_2.bias

    # s_tile_target=128 -> S=256 split into 2 lane-dense tiles (exercises tiling path).
    out = senet_pallas(x, w1, b1, w2, b2, s_tile_target=128)
    jax.block_until_ready(out)

    ref = senet_reference(x, w1, b1, w2, b2)
    assert out.shape == (N, C, D, H, W)
    assert jnp.allclose(out, ref, atol=1e-5, rtol=1e-5)

    print("KERNEL_OK")
</pallas_src>

<mosaic_0001>
module attributes {stable_mosaic.version = 11 : i64} {
  func.func @_se_reduce_excite_kernel(%arg0: i32, %arg1: i32, %arg2: memref<1x64x128xf32, #tpu.memory_space<vmem>>, %arg3: memref<4x64xf32, #tpu.memory_space<vmem>>, %arg4: memref<4x1xf32, #tpu.memory_space<vmem>>, %arg5: memref<64x4xf32, #tpu.memory_space<vmem>>, %arg6: memref<64x1xf32, #tpu.memory_space<vmem>>, %arg7: memref<1x64x1xf32, #tpu.memory_space<vmem>>, %arg8: memref<64x1xf32, #tpu.memory_space<vmem>>) attributes {dimension_semantics = [#tpu.dimension_semantics<parallel>, #tpu.dimension_semantics<arbitrary>], iteration_bounds = array<i64: 2, 2>, scalar_prefetch = 0 : i64, scratch_operands = 1 : i64, tpu.core_type = #tpu.core_type<tc>, window_params = [{transform_indices = @transform_0, window_bounds = array<i64: 1, 64, 128>}, {pipeline_mode = #tpu.pipeline_mode<synchronous>, transform_indices = @transform_1, window_bounds = array<i64: 4, 64>}, {pipeline_mode = #tpu.pipeline_mode<synchronous>, transform_indices = @transform_2, window_bounds = array<i64: 4, 1>}, {pipeline_mode = #tpu.pipeline_mode<synchronous>, transform_indices = @transform_3, window_bounds = array<i64: 64, 4>}, {pipeline_mode = #tpu.pipeline_mode<synchronous>, transform_indices = @transform_4, window_bounds = array<i64: 64, 1>}, {transform_indices = @transform_5, window_bounds = array<i64: 1, 64, 1>}]} {
    %c0_i32 = arith.constant 0 : i32
    %0 = arith.cmpi eq, %arg1, %c0_i32 : i32
    %1 = arith.extui %0 : i1 to i32
    %c0_i32_0 = arith.constant 0 : i32
    %2 = arith.cmpi ne, %1, %c0_i32_0 : i32
    scf.if %2 {
      %cst_8 = arith.constant 0.000000e+00 : f32
      %13 = vector.broadcast %cst_8 : f32 to vector<64x1xf32>
      %c0_9 = arith.constant 0 : index
      %c0_10 = arith.constant 0 : index
      %14 = vector.load %arg8[%c0_9, %c0_10] : memref<64x1xf32, #tpu.memory_space<vmem>>, vector<64x1xf32>
      tpu.vector_store %arg8[%c0_9, %c0_10], %13 {strides = array<i32>} : memref<64x1xf32, #tpu.memory_space<vmem>>, vector<64x1xf32>,
    } else {
    }
    %c0 = arith.constant 0 : index
    %c0_1 = arith.constant 0 : index
    %c0_2 = arith.constant 0 : index
    %3 = vector.load %arg2[%c0, %c0_1, %c0_2] : memref<1x64x128xf32, #tpu.memory_space<vmem>>, vector<1x64x128xf32>
    %4 = vector.shape_cast %3 : vector<1x64x128xf32> to vector<64x128xf32>
    %c0_3 = arith.constant 0 : index
    %c0_4 = arith.constant 0 : index
    %5 = vector.load %arg8[%c0_3, %c0_4] : memref<64x1xf32, #tpu.memory_space<vmem>>, vector<64x1xf32>
    %cst = arith.constant dense<0.000000e+00> : vector<64xf32>
    %6 = vector.multi_reduction <add>, %4, %cst [1] : vector<64x128xf32> to vector<64xf32>
    %7 = vector.shape_cast %6 : vector<64xf32> to vector<64x1xf32>
    %8 = arith.addf %5, %7 : vector<64x1xf32>
    %c0_5 = arith.constant 0 : index
    %c0_6 = arith.constant 0 : index
    %9 = vector.load %arg8[%c0_5, %c0_6] : memref<64x1xf32, #tpu.memory_space<vmem>>, vector<64x1xf32>
    tpu.vector_store %arg8[%c0_5, %c0_6], %8 {strides = array<i32>} : memref<64x1xf32, #tpu.memory_space<vmem>>, vector<64x1xf32>,
    %c1_i32 = arith.constant 1 : i32
    %10 = arith.cmpi eq, %arg1, %c1_i32 : i32
    %11 = arith.extui %10 : i1 to i32
    %c0_i32_7 = arith.constant 0 : i32
    %12 = arith.cmpi ne, %11, %c0_i32_7 : i32
    scf.if %12 {
      %c0_8 = arith.constant 0 : index
      %c0_9 = arith.constant 0 : index
      %13 = vector.load %arg8[%c0_8, %c0_9] : memref<64x1xf32, #tpu.memory_space<vmem>>, vector<64x1xf32>
      %cst_10 = arith.constant 3.906250e-03 : f32
      %14 = vector.broadcast %cst_10 : f32 to vector<64x1xf32>
      %15 = arith.mulf %13, %14 : vector<64x1xf32>
      %c0_11 = arith.constant 0 : index
      %c0_12 = arith.constant 0 : index
      %16 = vector.load %arg3[%c0_11, %c0_12] : memref<4x64xf32, #tpu.memory_space<vmem>>, vector<4x64xf32>
      %cst_13 = arith.constant dense<0.000000e+00> : vector<4x1xf32>
      %17 = tpu.matmul %16, %15, %cst_13 {dimension_numbers = #tpu.dot_dimension_numbers<[1], [0], [0], [1], [0, 0, 1, 1], [], []>} : vector<4x64xf32>, vector<64x1xf32>, vector<4x1xf32> -> vector<4x1xf32>
      %c0_14 = arith.constant 0 : index
      %c0_15 = arith.constant 0 : index
      %18 = vector.load %arg4[%c0_14, %c0_15] : memref<4x1xf32, #tpu.memory_space<vmem>>, vector<4x1xf32>
      %19 = arith.addf %17, %18 : vector<4x1xf32>
      %cst_16 = arith.constant 0.000000e+00 : f32
      %20 = vector.broadcast %cst_16 : f32 to vector<4x1xf32>
      %21 = arith.maximumf %19, %20 : vector<4x1xf32>
      %c0_17 = arith.constant 0 : index
      %c0_18 = arith.constant 0 : index
      %22 = vector.load %arg5[%c0_17, %c0_18] : memref<64x4xf32, #tpu.memory_space<vmem>>, vector<64x4xf32>
      %cst_19 = arith.constant dense<0.000000e+00> : vector<64x1xf32>
      %23 = tpu.matmul %22, %21, %cst_19 {dimension_numbers = #tpu.dot_dimension_numbers<[1], [0], [0], [1], [0, 0, 1, 1], [], []>} : vector<64x4xf32>, vector<4x1xf32>, vector<64x1xf32> -> vector<64x1xf32>
      %c0_20 = arith.constant 0 : index
      %c0_21 = arith.constant 0 : index
      %24 = vector.load %arg6[%c0_20, %c0_21] : memref<64x1xf32, #tpu.memory_space<vmem>>, vector<64x1xf32>
      %25 = arith.addf %23, %24 : vector<64x1xf32>
      %26 = arith.negf %25 : vector<64x1xf32>
      %27 = math.exp %26 : vector<64x1xf32>
      %cst_22 = arith.constant 1.000000e+00 : f32
      %28 = vector.broadcast %cst_22 : f32 to vector<64x1xf32>
      %29 = arith.addf %28, %27 : vector<64x1xf32>
      %30 = arith.divf %28, %29 : vector<64x1xf32>
      %c0_23 = arith.constant 0 : index
      %c0_24 = arith.constant 0 : index
      %c0_25 = arith.constant 0 : index
      %31 = vector.load %arg7[%c0_23, %c0_24, %c0_25] : memref<1x64x1xf32, #tpu.memory_space<vmem>>, vector<1x64x1xf32>
      %32 = vector.shape_cast %31 : vector<1x64x1xf32> to vector<64x1xf32>
      %33 = vector.shape_cast %30 : vector<64x1xf32> to vector<1x64x1xf32>
      tpu.vector_store %arg7[%c0_23, %c0_24, %c0_25], %33 {strides = array<i32>} : memref<1x64x1xf32, #tpu.memory_space<vmem>>, vector<1x64x1xf32>,
    } else {
    }
    return
  }
  func.func @transform_0(%arg0: i32, %arg1: i32) -> (i32, i32, i32) {
    %c0_i32 = arith.constant 0 : i32
    %c0_i32_0 = arith.constant 0 : i32
    return %arg0, %c0_i32, %arg1 : i32, i32, i32
  }
  func.func @transform_1(%arg0: i32, %arg1: i32) -> (i32, i32) {
    %c0_i32 = arith.constant 0 : i32
    %c0_i32_0 = arith.constant 0 : i32
    %c0_i32_1 = arith.constant 0 : i32
    return %c0_i32, %c0_i32_0 : i32, i32
  }
  func.func @transform_2(%arg0: i32, %arg1: i32) -> (i32, i32) {
    %c0_i32 = arith.constant 0 : i32
    %c0_i32_0 = arith.constant 0 : i32
    %c0_i32_1 = arith.constant 0 : i32
    return %c0_i32, %c0_i32_0 : i32, i32
  }
  func.func @transform_3(%arg0: i32, %arg1: i32) -> (i32, i32) {
    %c0_i32 = arith.constant 0 : i32
    %c0_i32_0 = arith.constant 0 : i32
    %c0_i32_1 = arith.constant 0 : i32
    return %c0_i32, %c0_i32_0 : i32, i32
  }
  func.func @transform_4(%arg0: i32, %arg1: i32) -> (i32, i32) {
    %c0_i32 = arith.constant 0 : i32
    %c0_i32_0 = arith.constant 0 : i32
    %c0_i32_1 = arith.constant 0 : i32
    return %c0_i32, %c0_i32_0 : i32, i32
  }
  func.func @transform_5(%arg0: i32, %arg1: i32) -> (i32, i32, i32) {
    %c0_i32 = arith.constant 0 : i32
    %c0_i32_0 = arith.constant 0 : i32
    %c0_i32_1 = arith.constant 0 : i32
    return %arg0, %c0_i32, %c0_i32_0 : i32, i32, i32
  }
}

</mosaic_0001>

<llo_original>
// kernel: tpu_custom_call.1
$region0: #{tpu_custom_call.1}
  #allocation0 [shape = 'u32[]', space=smem, size = 0x4, offset = 0x4, fixed_abs, tag = 'smem constant byte address 0x4 - core index']
  #allocation1 [shape = 'u32[144,128]{1,0:T(1,128)}', space=vmem, size = 0x12000, scoped, tag = 'internal scratch']
  #allocation2 [shape = 'f32[64,1]{1,0:T(8,128)}', space=vmem, size = 0x8000, scoped, tag = 'scratch operand']
  %s0 = inlined_call_operand.hbm [shape: f32[2,64,256], index: 0, kind: input, shape index: {}]
  %s1 = inlined_call_operand.vmem [shape: f32[4,64], index: 1, kind: input, shape index: {}]
  %s2 = inlined_call_operand.vmem [shape: f32[4,1], index: 2, kind: input, shape index: {}]
  %s3 = inlined_call_operand.vmem [shape: f32[64,4], index: 3, kind: input, shape index: {}]
  %s4 = inlined_call_operand.vmem [shape: f32[64,1], index: 4, kind: input, shape index: {}]
  %s5 = inlined_call_operand.vmem [shape: f32[2,64,1], index: 5, kind: output, shape index: {}]
  %s6 = sld [smem:[#allocation0]]
  $region65: #{tpu_custom_call.1} parent=0
    _
  %s8 = ssub.s32 1, %s6
  %s9 = scalar_select 0, %s8, %s6
  $region1: #{tpu_custom_call.1} parent=0
    #allocation3 [shape = 'u8[65536]{0}', space=vmem, size = 0x10000, scoped, tag = 'input window, operand 0']
    #allocation4 [shape = 's32[2]{0}', space=sflag, size = 0x8, scoped, tag = 'scoped memory for tpu_custom_call.1']
    %10 = vsyncpa [#allocation4], 0
    %s11 = scalar_lea.sflag [#allocation4], 1
    %12 = vsyncpa %s11, 0
    loop: start=0, step=1, limit=6
    $region2: #{tpu_custom_call.1} parent=1 // loop_pre_header
      _
    $region3: #{tpu_custom_call.1} parent=1 // loop_header
      %s14 = sphi 0, %s18
      %p15 = scmp.ge.s32.totalorder %s14, 6
      %s21 = sphi 0, %s33
      %s22 = sphi 0, %s29
      %s23 = sphi 0, %s21
      %s24 = sphi 0, %s22
      %s25 = sphi 0, %s23
      %s26 = sphi 0, %s24
      %s38 = sphi 0, %s40
      %s41 = sphi 0, %s38
      %s42 = sphi 0, %s41
      %s58 = sphi 0, %s42
      %s62 = sphi 0, %s62
      %s64 = sphi 0, %s62
      %s65 = sphi 0, %s64
      %s79 = sphi 0, %s65
      %s83 = sphi 0, %s83
      %s85 = sphi 0, %s83
      %s86 = sphi 0, %s85
      %s100 = sphi 0, %s86
      %s104 = sphi 0, %s104
      %s106 = sphi 0, %s104
      %s107 = sphi 0, %s106
      %s121 = sphi 0, %s107
      %s125 = sphi 0, %s125
      %s127 = sphi 0, %s125
      %s128 = sphi 0, %s127
      %s142 = sphi 0, %s128
      %s148 = sphi 0, %s150
      %s151 = sphi 0, %s148
      %s152 = sphi 0, %s151
      %s168 = sphi 0, %s152
    $region4: #{tpu_custom_call.1} parent=1 // loop_header_branch
      %17 = sbr.rel (%p15) target = $region8
    $region5: #{tpu_custom_call.1} parent=1 // loop_body
      %s19 = ssub.s32 %s14, 1
      %s20 = ssub.s32 %s14, 2
      %s27 = sadd.s32 1, %s22
      %p28 = scmp.ge.s32.totalorder %s27, 2
      %s29 = scalar_select %p28, 0, %s27
      %s30 = sadd.s32 1, %s21
      %s31 = scalar_select %p28, %s30, %s21
      %p32 = scmp.ge.s32.totalorder %s31, 2
      %s33 = scalar_select %p32, 0, %s31
      %s34 = ssub.s32 %s21, %s33
      %s35 = ssub.s32 %s22, %s29
      %s36 = sor.u32 %s34, %s35
      %p37 = scmp.eq.s32.totalorder %s36, 0
      %s39 = sadd.s32 %s38, 1
      %s40 = scalar_select %p37, %s38, %s39
      %p43 = pneg %p37
      %p44 = scmp.eq.s32.totalorder %s14, 3
      %p45 = por %p43, %p44
      %p46 = scmp.ne.s32.totalorder %s38, %s41
      %p47 = scmp.eq.s32.totalorder %s14, 0
      %p48 = por %p46, %p47
      %p49 = scmp.ne.s32.totalorder %s38, %s41
      %p50 = scmp.eq.s32.totalorder %s19, 3
      %p51 = por %p49, %p50
      %p52 = scmp.ne.s32.totalorder %s41, %s42
      %p53 = scmp.eq.s32.totalorder %s19, 0
      %p54 = por %p52, %p53
      %p55 = scmp.ne.s32.totalorder %s41, %s42
      %p56 = scmp.eq.s32.totalorder %s20, 3
      %p57 = por %p55, %p56
      %p59 = scmp.ne.s32.totalorder %s42, %s58
      %p60 = scmp.eq.s32.totalorder %s20, 0
      %p61 = por %p59, %p60
      %s63 = sadd.s32 %s62, 1
      %p66 = scmp.eq.s32.totalorder %s14, 3
      %p67 = scmp.ne.s32.totalorder %s62, %s64
      %p68 = scmp.eq.s32.totalorder %s14, 0
      %p69 = por %p67, %p68
      %p70 = scmp.ne.s32.totalorder %s62, %s64
      %p71 = scmp.eq.s32.totalorder %s19, 3
      %p72 = por %p70, %p71
      %p73 = scmp.ne.s32.totalorder %s64, %s65
      %p74 = scmp.eq.s32.totalorder %s19, 0
      %p75 = por %p73, %p74
      %p76 = scmp.ne.s32.totalorder %s64, %s65
      %p77 = scmp.eq.s32.totalorder %s20, 3
      %p78 = por %p76, %p77
      %p80 = scmp.ne.s32.totalorder %s65, %s79
      %p81 = scmp.eq.s32.totalorder %s20, 0
      %p82 = por %p80, %p81
      %s84 = sadd.s32 %s83, 1
      %p87 = scmp.eq.s32.totalorder %s14, 3
      %p88 = scmp.ne.s32.totalorder %s83, %s85
      %p89 = scmp.eq.s32.totalorder %s14, 0
      %p90 = por %p88, %p89
      %p91 = scmp.ne.s32.totalorder %s83, %s85
      %p92 = scmp.eq.s32.totalorder %s19, 3
      %p93 = por %p91, %p92
      %p94 = scmp.ne.s32.totalorder %s85, %s86
      %p95 = scmp.eq.s32.totalorder %s19, 0
      %p96 = por %p94, %p95
      %p97 = scmp.ne.s32.totalorder %s85, %s86
      %p98 = scmp.eq.s32.totalorder %s20, 3
      %p99 = por %p97, %p98
      %p101 = scmp.ne.s32.totalorder %s86, %s100
      %p102 = scmp.eq.s32.totalorder %s20, 0
      %p103 = por %p101, %p102
      %s105 = sadd.s32 %s104, 1
      %p108 = scmp.eq.s32.totalorder %s14, 3
      %p109 = scmp.ne.s32.totalorder %s104, %s106
      %p110 = scmp.eq.s32.totalorder %s14, 0
      %p111 = por %p109, %p110
      %p112 = scmp.ne.s32.totalorder %s104, %s106
      %p113 = scmp.eq.s32.totalorder %s19, 3
      %p114 = por %p112, %p113
      %p115 = scmp.ne.s32.totalorder %s106, %s107
      %p116 = scmp.eq.s32.totalorder %s19, 0
      %p117 = por %p115, %p116
      %p118 = scmp.ne.s32.totalorder %s106, %s107
      %p119 = scmp.eq.s32.totalorder %s20, 3
      %p120 = por %p118, %p119
      %p122 = scmp.ne.s32.totalorder %s107, %s121
      %p123 = scmp.eq.s32.totalorder %s20, 0
      %p124 = por %p122, %p123
      %s126 = sadd.s32 %s125, 1
      %p129 = scmp.eq.s32.totalorder %s14, 3
      %p130 = scmp.ne.s32.totalorder %s125, %s127
      %p131 = scmp.eq.s32.totalorder %s14, 0
      %p132 = por %p130, %p131
      %p133 = scmp.ne.s32.totalorder %s125, %s127
      %p134 = scmp.eq.s32.totalorder %s19, 3
      %p135 = por %p133, %p134
      %p136 = scmp.ne.s32.totalorder %s127, %s128
      %p137 = scmp.eq.s32.totalorder %s19, 0
      %p138 = por %p136, %p137
      %p139 = scmp.ne.s32.totalorder %s127, %s128
      %p140 = scmp.eq.s32.totalorder %s20, 3
      %p141 = por %p139, %p140
      %p143 = scmp.ne.s32.totalorder %s128, %s142
      %p144 = scmp.eq.s32.totalorder %s20, 0
      %p145 = por %p143, %p144
      %s146 = ssub.s32 %s21, %s33
      %p147 = scmp.eq.s32.totalorder %s146, 0
      %s149 = sadd.s32 %s148, 1
      %s150 = scalar_select %p147, %s148, %s149
      %p153 = pneg %p147
      %p154 = scmp.eq.s32.totalorder %s14, 3
      %p155 = por %p153, %p154
      %p156 = scmp.ne.s32.totalorder %s148, %s151
      %p157 = scmp.eq.s32.totalorder %s14, 0
      %p158 = por %p156, %p157
      %p159 = scmp.ne.s32.totalorder %s148, %s151
      %p160 = scmp.eq.s32.totalorder %s19, 3
      %p161 = por %p159, %p160
      %p162 = scmp.ne.s32.totalorder %s151, %s152
      %p163 = scmp.eq.s32.totalorder %s19, 0
      %p164 = por %p162, %p163
      %p165 = scmp.ne.s32.totalorder %s151, %s152
      %p166 = scmp.eq.s32.totalorder %s20, 3
      %p167 = por %p165, %p166
      %p169 = scmp.ne.s32.totalorder %s152, %s168
      %p170 = scmp.eq.s32.totalorder %s20, 0
      %p171 = por %p169, %p170
      %p172 = scmp.le.s32.totalorder 1, %s14
      %p173 = scmp.lt.s32.totalorder %s14, 5
      %p174 = pnand %p172, %p173
      %p175 = pneg %p174
      // Predicated region
      $region9: #{tpu_custom_call.1} parent=5 // pred_check
        _
      $region10: #{tpu_custom_call.1} parent=5 // pred_check_branch
        %177 = sbr.rel (%p174) target = $region12
      $region11: #{tpu_custom_call.1} parent=5 // pred_region
        %s178 = ssub.s32 %s14, 1
        // Predicated region
        $region13: #{tpu_custom_call.1} parent=11 // pred_check
          %p179 = pneg %p75
        $region14: #{tpu_custom_call.1} parent=11 // pred_check_branch
          %181 = sbr.rel (%p179) target = $region16
        $region15: #{tpu_custom_call.1} parent=11 // pred_region
          _
        $region16: #{tpu_custom_call.1} parent=11 // pred_fallthru
          _
        // Predicated region
        $region17: #{tpu_custom_call.1} parent=11 // pred_check
          %p182 = pneg %p96
        $region18: #{tpu_custom_call.1} parent=11 // pred_check_branch
          %184 = sbr.rel (%p182) target = $region20
        $region19: #{tpu_custom_call.1} parent=11 // pred_region
          _
        $region20: #{tpu_custom_call.1} parent=11 // pred_fallthru
          _
        // Predicated region
        $region21: #{tpu_custom_call.1} parent=11 // pred_check
          %p185 = pneg %p117
        $region22: #{tpu_custom_call.1} parent=11 // pred_check_branch
          %187 = sbr.rel (%p185) target = $region24
        $region23: #{tpu_custom_call.1} parent=11 // pred_region
          _
        $region24: #{tpu_custom_call.1} parent=11 // pred_fallthru
          _
        // Predicated region
        $region25: #{tpu_custom_call.1} parent=11 // pred_check
          %p188 = pneg %p138
        $region26: #{tpu_custom_call.1} parent=11 // pred_check_branch
          %190 = sbr.rel (%p188) target = $region28
        $region27: #{tpu_custom_call.1} parent=11 // pred_region
          _
        $region28: #{tpu_custom_call.1} parent=11 // pred_fallthru
          _
      $region12: #{tpu_custom_call.1} parent=5 // pred_fallthru
        _
      %p191 = scmp.lt.s32.totalorder %s14, 4
      // Predicated region
      $region29: #{tpu_custom_call.1} parent=5 // pred_check
        %p192 = pneg %p191
      $region30: #{tpu_custom_call.1} parent=5 // pred_check_branch
        %194 = sbr.rel (%p192) target = $region32
      $region31: #{tpu_custom_call.1} parent=5 // pred_region
        // Predicated region
        $region33: #{tpu_custom_call.1} parent=31 // pred_check
          %p195 = pneg %p48
        $region34: #{tpu_custom_call.1} parent=31 // pred_check_branch
          %197 = sbr.rel (%p195) target = $region36
        $region35: #{tpu_custom_call.1} parent=31 // pred_region
          %s198 = sand.u32 %s38, 1
          %s199 = scalar_lea.sflag [#allocation4], %s198
          %s200 = sand.u32 %s38, 1
          %s201 = smul.addr %s200, 64
          %s202 = scalar_lea.vmem [#allocation3], %s201
          %s204 = ssub.s32 1024, 1024
          %205 = vsyncadd %s199, %s204
          %s206 = smul.addr %s21, 16
          %s207 = sadd.s32 %s22, %s206
          %s208 = smul.addr %s207, 128
          %s209 = scalar_lea.hbm %s0, %s208
          %s210 = sshll.u32 %s202, 4
          %s211 = int_to_ptr.vmem [resolvable:$true] %s210
          %216 = dma.hbm_to_vmem [thread:$0]  %s209, 1024, %s211, %s199, 256, 128, 8
        $region36: #{tpu_custom_call.1} parent=31 // pred_fallthru
          _
      $region32: #{tpu_custom_call.1} parent=5 // pred_fallthru
        _
      %p217 = scmp.le.s32.totalorder 1, %s14
      %p218 = scmp.lt.s32.totalorder %s14, 5
      %p219 = pnand %p217, %p218
      %p220 = pneg %p219
      // Predicated region
      $region37: #{tpu_custom_call.1} parent=5 // pred_check
        _
      $region38: #{tpu_custom_call.1} parent=5 // pred_check_branch
        %222 = sbr.rel (%p219) target = $region40
      $region39: #{tpu_custom_call.1} parent=5 // pred_region
        %s223 = ssub.s32 %s14, 1
        %s224 = sand.u32 %s41, 1
        %s225 = scalar_lea.sflag [#allocation4], %s224
        %s226 = sand.u32 %s41, 1
        %s227 = smul.addr %s226, 64
        %s228 = scalar_lea.vmem [#allocation3], %s227
        // Predicated region
        $region41: #{tpu_custom_call.1} parent=39 // pred_check
          %p229 = pneg %p54
        $region42: #{tpu_custom_call.1} parent=39 // pred_check_branch
          %231 = sbr.rel (%p229) target = $region44
        $region43: #{tpu_custom_call.1} parent=39 // pred_region
          %232 = dma.done %s225, 1024
        $region44: #{tpu_custom_call.1} parent=39 // pred_fallthru
          _
        %s233 = sand.u32 %s41, 1
        %s234 = scalar_lea.sflag [#allocation4], %s233
        %s235 = sand.u32 %s41, 1
        %s236 = smul.addr %s235, 64
        %s237 = scalar_lea.vmem [#allocation3], %s236
        %p238 = pneg %p54
        %p239 = pneg %p51
        %p240 = pneg %p75
        %p241 = pneg %p72
        %p242 = pneg %p96
        %p243 = pneg %p93
        %p244 = pneg %p117
        %p245 = pneg %p114
        %p246 = pneg %p138
        %p247 = pneg %p135
        %p248 = pneg %p164
        %p249 = pneg %p161
        %p250 = scmp.lt.s32.totalorder %s23, 1
        %s251 = scalar_select %p250, %s23, 1
        %s252 = smul.addr %s251, 8
        %s253 = smul.addr %s252, 8
        %s254 = scalar_lea.vmem %s5, %s253
        %p255 = scmp.lt.s32.totalorder %s23, 1
        %s256 = scalar_select %p255, %s23, 1
        %s257 = smul.addr %s256, 8
        %s258 = smul.addr %s257, 8
        %s259 = scalar_lea.vmem %s5, %s258
        %p260 = scmp.eq.s32.totalorder %s24, 0
        // Predicated region
        $region45: #{tpu_custom_call.1} parent=39 // pred_check
          %p261 = pneg %p260
        $region46: #{tpu_custom_call.1} parent=39 // pred_check_branch
          %263 = sbr.rel (%p261) target = $region48
        $region47: #{tpu_custom_call.1} parent=39 // pred_region
          %vm264 = vcmask 7168
          %265 = vst.msk [vmem:[#allocation2] sm:$0xff] %vm264, 0.0
          %266 = vst.msk [vmem:[#allocation2 + $0x8] sm:$0xff] %vm264, 0.0
          %267 = vst.msk [vmem:[#allocation2 + $0x10] sm:$0xff] %vm264, 0.0
          %268 = vst.msk [vmem:[#allocation2 + $0x18] sm:$0xff] %vm264, 0.0
          %269 = vst.msk [vmem:[#allocation2 + $0x20] sm:$0xff] %vm264, 0.0
          %270 = vst.msk [vmem:[#allocation2 + $0x28] sm:$0xff] %vm264, 0.0
          %271 = vst.msk [vmem:[#allocation2 + $0x30] sm:$0xff] %vm264, 0.0
          %272 = vst.msk [vmem:[#allocation2 + $0x38] sm:$0xff] %vm264, 0.0
        $region48: #{tpu_custom_call.1} parent=39 // pred_fallthru
          _
        %v273 = vld [vmem:[%s228] sm:$0xff]
        %v274 = vld [vmem:[%s228 + $0x8] sm:$0xff]
        %v275 = vld [vmem:[%s228 + $0x10] sm:$0xff]
        %v276 = vld [vmem:[%s228 + $0x18] sm:$0xff]
        %v277 = vld [vmem:[%s228 + $0x20] sm:$0xff]
        %v278 = vld [vmem:[%s228 + $0x28] sm:$0xff]
        %v279 = vld [vmem:[%s228 + $0x30] sm:$0xff]
        %v280 = vld [vmem:[%s228 + $0x38] sm:$0xff]
        %v281 = vld [vmem:[#allocation2] sm:$0xff]
        %v282 = vld [vmem:[#allocation2 + $0x8] sm:$0xff]
        %v283 = vld [vmem:[#allocation2 + $0x10] sm:$0xff]
        %v284 = vld [vmem:[#allocation2 + $0x18] sm:$0xff]
        %v285 = vld [vmem:[#allocation2 + $0x20] sm:$0xff]
        %v286 = vld [vmem:[#allocation2 + $0x28] sm:$0xff]
        %v287 = vld [vmem:[#allocation2 + $0x30] sm:$0xff]
        %v288 = vld [vmem:[#allocation2 + $0x38] sm:$0xff]
        %289 = vadd.xlane.f32.xlu0 %v273
        %v290 = vpop.xlane.xlu0 %289
        %291 = vadd.xlane.f32.xlu0 %v274
        %v292 = vpop.xlane.xlu0 %291
        %293 = vadd.xlane.f32.xlu0 %v275
        %v294 = vpop.xlane.xlu0 %293
        %295 = vadd.xlane.f32.xlu0 %v276
        %v296 = vpop.xlane.xlu0 %295
        %297 = vadd.xlane.f32.xlu0 %v277
        %v298 = vpop.xlane.xlu0 %297
        %299 = vadd.xlane.f32.xlu0 %v278
        %v300 = vpop.xlane.xlu0 %299
        %301 = vadd.xlane.f32.xlu0 %v279
        %v302 = vpop.xlane.xlu0 %301
        %303 = vadd.xlane.f32.xlu0 %v280
        %v304 = vpop.xlane.xlu0 %303
        %v305 = vadd.f32 %v281, %v290
        %v306 = vadd.f32 %v282, %v292
        %v307 = vadd.f32 %v283, %v294
        %v308 = vadd.f32 %v284, %v296
        %v309 = vadd.f32 %v285, %v298
        %v310 = vadd.f32 %v286, %v300
        %v311 = vadd.f32 %v287, %v302
        %v312 = vadd.f32 %v288, %v304
        %vm313 = vcmask 7168
        %314 = vst.msk [vmem:[#allocation2] sm:$0xff] %vm313, %v305
        %315 = vst.msk [vmem:[#allocation2 + $0x8] sm:$0xff] %vm313, %v306
        %316 = vst.msk [vmem:[#allocation2 + $0x10] sm:$0xff] %vm313, %v307
        %317 = vst.msk [vmem:[#allocation2 + $0x18] sm:$0xff] %vm313, %v308
        %318 = vst.msk [vmem:[#allocation2 + $0x20] sm:$0xff] %vm313, %v309
        %319 = vst.msk [vmem:[#allocation2 + $0x28] sm:$0xff] %vm313, %v310
        %320 = vst.msk [vmem:[#allocation2 + $0x30] sm:$0xff] %vm313, %v311
        %321 = vst.msk [vmem:[#allocation2 + $0x38] sm:$0xff] %vm313, %v312
        %p322 = scmp.eq.s32.totalorder %s24, 1
        // Predicated region
        $region49: #{tpu_custom_call.1} parent=39 // pred_check
          %p323 = pneg %p322
        $region50: #{tpu_custom_call.1} parent=39 // pred_check_branch
          %325 = sbr.rel (%p323) target = $region52
        $region51: #{tpu_custom_call.1} parent=39 // pred_region
          %v326 = vld [vmem:[#allocation2] sm:$0xff]
          %v327 = vld [vmem:[#allocation2 + $0x8] sm:$0xff]
          %v328 = vld [vmem:[#allocation2 + $0x10] sm:$0xff]
          %v329 = vld [vmem:[#allocation2 + $0x18] sm:$0xff]
          %v330 = vld [vmem:[#allocation2 + $0x20] sm:$0xff]
          %v331 = vld [vmem:[#allocation2 + $0x28] sm:$0xff]
          %v332 = vld [vmem:[#allocation2 + $0x30] sm:$0xff]
          %v333 = vld [vmem:[#allocation2 + $0x38] sm:$0xff]
          %v334 = vmul.f32 %v326, 0.00390625
          %v335 = vmul.f32 %v327, 0.00390625
          %v336 = vmul.f32 %v328, 0.00390625
          %v337 = vmul.f32 %v329, 0.00390625
          %v338 = vmul.f32 %v330, 0.00390625
          %v339 = vmul.f32 %v331, 0.00390625
          %v340 = vmul.f32 %v332, 0.00390625
          %v341 = vmul.f32 %v333, 0.00390625
          %v342 = vld [vmem:[%s1] sm:$0xf]
          %v343 = vld [vmem:[%s2] sm:$0xf]
          %vm344 = vcmask 523264
          %v346 = vsel %vm344, %v342, 0
          %348 = vmatprep.subr.mxu0 0.0
          %349 = vmatpush1.msra.mxu0 0.0
          %350 = vmatprep.subr.mxu0 0.0
          %351 = vmatpush1.msra.mxu0 0.0
          %352 = vmatprep.subr.mxu0 0.0
          %353 = vmatpush1.msra.mxu0 0.0
          %354 = vmatprep.subr.mxu0 0.0
          %355 = vmatpush1.msra.mxu0 0.0
          %356 = vmatprep.subr.mxu0 0.0
          %357 = vmatpush1.msra.mxu0 0.0
          %358 = vmatprep.subr.mxu0 0.0
          %359 = vmatpush1.msra.mxu0 0.0
          %360 = vmatprep.subr.mxu0 0.0
          %361 = vmatpush1.msra.mxu0 0.0
          %362 = vmatprep.subr.mxu0 0.0
          %363 = vmatpush1.msra.mxu0 0.0
          %364 = vmatprep.subr.mxu0 0.0
          %365 = vmatpush1.msra.mxu0 %v341
          %366 = vmatprep.subr.mxu0 0.0
          %367 = vmatpush1.msra.mxu0 %v340
          %368 = vmatprep.subr.mxu0 0.0
          %369 = vmatpush1.msra.mxu0 %v339
          %370 = vmatprep.subr.mxu0 0.0
          %371 = vmatpush1.msra.mxu0 %v338
          %372 = vmatprep.subr.mxu0 0.0
          %373 = vmatpush1.msra.mxu0 %v337
          %374 = vmatprep.subr.mxu0 0.0
          %375 = vmatpush1.msra.mxu0 %v336
          %376 = vmatprep.subr.mxu0 0.0
          %377 = vmatpush1.msra.mxu0 %v335
          %378 = vmatprep.subr.mxu0 0.0
          %379 = vmatpush1.msra.mxu0 %v334
          %380 = vmatprep.subr.mxu0 0.0
          %381 = vmatpush2.msra.mxu0 0.0
          %382 = vmatprep.subr.mxu0 0.0
          %383 = vmatpush2.msra.mxu0 0.0
          %384 = vmatprep.subr.mxu0 0.0
          %385 = vmatpush2.msra.mxu0 0.0
          %386 = vmatprep.subr.mxu0 0.0
          %387 = vmatpush2.msra.mxu0 0.0
          %388 = vmatprep.subr.mxu0 0.0
          %389 = vmatpush2.msra.mxu0 0.0
          %390 = vmatprep.subr.mxu0 0.0
          %391 = vmatpush2.msra.mxu0 0.0
          %392 = vmatprep.subr.mxu0 0.0
          %393 = vmatpush2.msra.mxu0 0.0
          %394 = vmatprep.subr.mxu0 0.0
          %395 = vmatpush2.msra.mxu0 0.0
          %396 = vmatprep.subr.mxu0 0.0
          %397 = vmatpush2.msra.mxu0 0.0
          %398 = vmatprep.subr.mxu0 0.0
          %399 = vmatpush2.msra.mxu0 0.0
          %400 = vmatprep.subr.mxu0 0.0
          %401 = vmatpush2.msra.mxu0 0.0
          %402 = vmatprep.subr.mxu0 0.0
          %403 = vmatpush2.msra.mxu0 0.0
          %404 = vmatprep.subr.mxu0 0.0
          %405 = vmatpush2.msra.mxu0 0.0
          %406 = vmatprep.subr.mxu0 0.0
          %407 = vmatpush2.msra.mxu0 0.0
          %408 = vmatprep.subr.mxu0 0.0
          %409 = vmatpush2.msra.mxu0 0.0
          %410 = vmatprep.subr.mxu0 0.0
          %411 = vmatpush2.msra.mxu0 0.0
          %412 = vmatprep.mubr.f32.mxu0 0.0
          %413 = vmatmul.mubr.f32.gmra.mxu0 %v346
          %v414 = vpop.f32.mrf.mxu0
          %v415 = vadd.f32 %v343, %v414
          %v416 = vpop.f32.mrf.mxu0
          %417 = vdwg.mxu0
          %v418 = vmax.f32 %v415, 0.0
          %v419 = vld [vmem:[%s3] sm:$0xff]
          %v420 = vld [vmem:[%s3 + $0x8] sm:$0xff]
          %v421 = vld [vmem:[%s3 + $0x10] sm:$0xff]
          %v422 = vld [vmem:[%s3 + $0x18] sm:$0xff]
          %v423 = vld [vmem:[%s3 + $0x20] sm:$0xff]
          %v424 = vld [vmem:[%s3 + $0x28] sm:$0xff]
          %v425 = vld [vmem:[%s3 + $0x30] sm:$0xff]
          %v426 = vld [vmem:[%s3 + $0x38] sm:$0xff]
          %v427 = vld [vmem:[%s4] sm:$0xff]
          %v428 = vld [vmem:[%s4 + $0x8] sm:$0xff]
          %v429 = vld [vmem:[%s4 + $0x10] sm:$0xff]
          %v430 = vld [vmem:[%s4 + $0x18] sm:$0xff]
          %v431 = vld [vmem:[%s4 + $0x20] sm:$0xff]
          %v432 = vld [vmem:[%s4 + $0x28] sm:$0xff]
          %v433 = vld [vmem:[%s4 + $0x30] sm:$0xff]
          %v434 = vld [vmem:[%s4 + $0x38] sm:$0xff]
          %vm435 = vcmask 31744
          %v437 = vsel %vm435, %v419, 0
          %v440 = vsel %vm435, %v420, 0
          %v443 = vsel %vm435, %v421, 0
          %v446 = vsel %vm435, %v422, 0
          %v449 = vsel %vm435, %v423, 0
          %v452 = vsel %vm435, %v424, 0
          %v455 = vsel %vm435, %v425, 0
          %v458 = vsel %vm435, %v426, 0
          %vm460 = vcmask 1043456
          %v462 = vsel %vm460, %v418, 0
          %464 = vmatprep.subr.mxu0 0.0
          %465 = vmatpush1.msra.mxu0 0.0
          %466 = vmatprep.subr.mxu0 0.0
          %467 = vmatpush1.msra.mxu0 0.0
          %468 = vmatprep.subr.mxu0 0.0
          %469 = vmatpush1.msra.mxu0 0.0
          %470 = vmatprep.subr.mxu0 0.0
          %471 = vmatpush1.msra.mxu0 0.0
          %472 = vmatprep.subr.mxu0 0.0
          %473 = vmatpush1.msra.mxu0 0.0
          %474 = vmatprep.subr.mxu0 0.0
          %475 = vmatpush1.msra.mxu0 0.0
          %476 = vmatprep.subr.mxu0 0.0
          %477 = vmatpush1.msra.mxu0 0.0
          %478 = vmatprep.subr.mxu0 0.0
          %479 = vmatpush1.msra.mxu0 0.0
          %480 = vmatprep.subr.mxu0 0.0
          %481 = vmatpush1.msra.mxu0 0.0
          %482 = vmatprep.subr.mxu0 0.0
          %483 = vmatpush1.msra.mxu0 0.0
          %484 = vmatprep.subr.mxu0 0.0
          %485 = vmatpush1.msra.mxu0 0.0
          %486 = vmatprep.subr.mxu0 0.0
          %487 = vmatpush1.msra.mxu0 0.0
          %488 = vmatprep.subr.mxu0 0.0
          %489 = vmatpush1.msra.mxu0 0.0
          %490 = vmatprep.subr.mxu0 0.0
          %491 = vmatpush1.msra.mxu0 0.0
          %492 = vmatprep.subr.mxu0 0.0
          %493 = vmatpush1.msra.mxu0 0.0
          %494 = vmatprep.subr.mxu0 0.0
          %495 = vmatpush1.msra.mxu0 %v462
          %496 = vmatprep.subr.mxu0 0.0
          %497 = vmatpush2.msra.mxu0 0.0
          %498 = vmatprep.subr.mxu0 0.0
          %499 = vmatpush2.msra.mxu0 0.0
          %500 = vmatprep.subr.mxu0 0.0
          %501 = vmatpush2.msra.mxu0 0.0
          %502 = vmatprep.subr.mxu0 0.0
          %503 = vmatpush2.msra.mxu0 0.0
          %504 = vmatprep.subr.mxu0 0.0
          %505 = vmatpush2.msra.mxu0 0.0
          %506 = vmatprep.subr.mxu0 0.0
          %507 = vmatpush2.msra.mxu0 0.0
          %508 = vmatprep.subr.mxu0 0.0
          %509 = vmatpush2.msra.mxu0 0.0
          %510 = vmatprep.subr.mxu0 0.0
          %511 = vmatpush2.msra.mxu0 0.0
          %512 = vmatprep.subr.mxu0 0.0
          %513 = vmatpush2.msra.mxu0 0.0
          %514 = vmatprep.subr.mxu0 0.0
          %515 = vmatpush2.msra.mxu0 0.0
          %516 = vmatprep.subr.mxu0 0.0
          %517 = vmatpush2.msra.mxu0 0.0
          %518 = vmatprep.subr.mxu0 0.0
          %519 = vmatpush2.msra.mxu0 0.0
          %520 = vmatprep.subr.mxu0 0.0
          %521 = vmatpush2.msra.mxu0 0.0
          %522 = vmatprep.subr.mxu0 0.0
          %523 = vmatpush2.msra.mxu0 0.0
          %524 = vmatprep.subr.mxu0 0.0
          %525 = vmatpush2.msra.mxu0 0.0
          %526 = vmatprep.subr.mxu0 0.0
          %527 = vmatpush2.msra.mxu0 0.0
          %528 = vmatprep.mubr.f32.mxu0 0.0
          %529 = vmatmul.mubr.f32.gmra.mxu0 %v437
          %v530 = vpop.f32.mrf.mxu0
          %v531 = vadd.f32 %v427, %v530
          %v532 = vpop.f32.mrf.mxu0
          %533 = vmatprep.mubr.f32.mxu0 0.0
          %534 = vmatmul.mubr.f32.gmra.mxu0 %v440
          %v535 = vpop.f32.mrf.mxu0
          %v536 = vadd.f32 %v428, %v535
          %v537 = vpop.f32.mrf.mxu0
          %538 = vmatprep.mubr.f32.mxu0 0.0
          %539 = vmatmul.mubr.f32.gmra.mxu0 %v443
          %v540 = vpop.f32.mrf.mxu0
          %v541 = vadd.f32 %v429, %v540
          %v542 = vpop.f32.mrf.mxu0
          %543 = vmatprep.mubr.f32.mxu0 0.0
          %544 = vmatmul.mubr.f32.gmra.mxu0 %v446
          %v545 = vpop.f32.mrf.mxu0
          %v546 = vadd.f32 %v430, %v545
          %v547 = vpop.f32.mrf.mxu0
          %548 = vmatprep.mubr.f32.mxu0 0.0
          %549 = vmatmul.mubr.f32.gmra.mxu0 %v449
          %v550 = vpop.f32.mrf.mxu0
          %v551 = vadd.f32 %v431, %v550
          %v552 = vpop.f32.mrf.mxu0
          %553 = vmatprep.mubr.f32.mxu0 0.0
          %554 = vmatmul.mubr.f32.gmra.mxu0 %v452
          %v555 = vpop.f32.mrf.mxu0
          %v556 = vadd.f32 %v432, %v555
          %v557 = vpop.f32.mrf.mxu0
          %558 = vmatprep.mubr.f32.mxu0 0.0
          %559 = vmatmul.mubr.f32.gmra.mxu0 %v455
          %v560 = vpop.f32.mrf.mxu0
          %v561 = vadd.f32 %v433, %v560
          %v562 = vpop.f32.mrf.mxu0
          %563 = vmatprep.mubr.f32.mxu0 0.0
          %564 = vmatmul.mubr.f32.gmra.mxu0 %v458
          %v565 = vpop.f32.mrf.mxu0
          %v566 = vadd.f32 %v434, %v565
          %v567 = vpop.f32.mrf.mxu0
          %568 = vdwg.mxu0
          %v569 = vxor.u32 %v531, 2147483648
          %v570 = vxor.u32 %v536, 2147483648
          %v571 = vxor.u32 %v541, 2147483648
          %v572 = vxor.u32 %v546, 2147483648
          %v573 = vxor.u32 %v551, 2147483648
          %v574 = vxor.u32 %v556, 2147483648
          %v575 = vxor.u32 %v561, 2147483648
          %v576 = vxor.u32 %v566, 2147483648
          %v577 = vmul.f32 %v569, 1.442695
          %v578 = vpow.pop %v577
          %v579 = vmul.f32 %v570, 1.442695
          %v580 = vpow.pop %v579
          %v581 = vmul.f32 %v571, 1.442695
          %v582 = vpow.pop %v581
          %v583 = vmul.f32 %v572, 1.442695
          %v584 = vpow.pop %v583
          %v585 = vmul.f32 %v573, 1.442695
          %v586 = vpow.pop %v585
          %v587 = vmul.f32 %v574, 1.442695
          %v588 = vpow.pop %v587
          %v589 = vmul.f32 %v575, 1.442695
          %v590 = vpow.pop %v589
          %v591 = vmul.f32 %v576, 1.442695
          %v592 = vpow.pop %v591
          %v593 = vadd.f32 %v578, 1.0
          %v594 = vadd.f32 %v580, 1.0
          %v595 = vadd.f32 %v582, 1.0
          %v596 = vadd.f32 %v584, 1.0
          %v597 = vadd.f32 %v586, 1.0
          %v598 = vadd.f32 %v588, 1.0
          %v599 = vadd.f32 %v590, 1.0
          %v600 = vadd.f32 %v592, 1.0
          %v601 = vrcp.pop %v593
          %v602 = vmul.f32 1.0, %v601
          %v603 = vrcp.pop %v594
          %v604 = vmul.f32 1.0, %v603
          %v605 = vrcp.pop %v595
          %v606 = vmul.f32 1.0, %v605
          %v607 = vrcp.pop %v596
          %v608 = vmul.f32 1.0, %v607
          %v609 = vrcp.pop %v597
          %v610 = vmul.f32 1.0, %v609
          %v611 = vrcp.pop %v598
          %v612 = vmul.f32 1.0, %v611
          %v613 = vrcp.pop %v599
          %v614 = vmul.f32 1.0, %v613
          %v615 = vrcp.pop %v600
          %v616 = vmul.f32 1.0, %v615
          %617 = vst.msk [vmem:[%s259] sm:$0xff] %vm313, %v602
          %618 = vst.msk [vmem:[%s259 + $0x8] sm:$0xff] %vm313, %v604
          %619 = vst.msk [vmem:[%s259 + $0x10] sm:$0xff] %vm313, %v606
          %620 = vst.msk [vmem:[%s259 + $0x18] sm:$0xff] %vm313, %v608
          %621 = vst.msk [vmem:[%s259 + $0x20] sm:$0xff] %vm313, %v610
          %622 = vst.msk [vmem:[%s259 + $0x28] sm:$0xff] %vm313, %v612
          %623 = vst.msk [vmem:[%s259 + $0x30] sm:$0xff] %vm313, %v614
          %624 = vst.msk [vmem:[%s259 + $0x38] sm:$0xff] %vm313, %v616
        $region52: #{tpu_custom_call.1} parent=39 // pred_fallthru
          _
        %p625 = scmp.lt.s32.totalorder %s23, 1
        %s626 = scalar_select %p625, %s23, 1
        %s627 = smul.addr %s626, 8
        %s628 = smul.addr %s627, 8
        %s629 = scalar_lea.vmem %s5, %s628
        // Predicated region
        $region53: #{tpu_custom_call.1} parent=39 // pred_check
          %p630 = pneg %p161
        $region54: #{tpu_custom_call.1} parent=39 // pred_check_branch
          %632 = sbr.rel (%p630) target = $region56
        $region55: #{tpu_custom_call.1} parent=39 // pred_region
          _
        $region56: #{tpu_custom_call.1} parent=39 // pred_fallthru
          _
      $region40: #{tpu_custom_call.1} parent=5 // pred_fallthru
        _
      %p633 = scmp.le.s32.totalorder 2, %s14
      // Predicated region
      $region57: #{tpu_custom_call.1} parent=5 // pred_check
        %p634 = pneg %p633
      $region58: #{tpu_custom_call.1} parent=5 // pred_check_branch
        %636 = sbr.rel (%p634) target = $region60
      $region59: #{tpu_custom_call.1} parent=5 // pred_region
        %s637 = ssub.s32 %s14, 2
        // Predicated region
        $region61: #{tpu_custom_call.1} parent=59 // pred_check
          %p638 = pneg %p167
        $region62: #{tpu_custom_call.1} parent=59 // pred_check_branch
          %640 = sbr.rel (%p638) target = $region64
        $region63: #{tpu_custom_call.1} parent=59 // pred_region
          %p641 = scmp.lt.s32.totalorder %s25, 1
          %s642 = scalar_select %p641, %s25, 1
          %s643 = smul.addr %s642, 8
          %s644 = smul.addr %s643, 8
          %s645 = scalar_lea.vmem %s5, %s644
        $region64: #{tpu_custom_call.1} parent=59 // pred_fallthru
          _
      $region60: #{tpu_custom_call.1} parent=5 // pred_fallthru
        _
    $region6: #{tpu_custom_call.1} parent=1 // loop_footer
      %s18 = sadd.s32 1, %s14
    $region7: #{tpu_custom_call.1} parent=1 // loop_footer_branch
      %13 = sbr.rel target = $region3
    $region8: #{tpu_custom_call.1} parent=1 // loop_exit
      _
    %646 = vsyncpa [#allocation4], 1
    %s647 = scalar_lea.sflag [#allocation4], 1
    %648 = vsyncpa %s647, 1

</llo_original>
